<compile_context>
chip_gen: v7x
topology: tpu7x:2x2x1
jax: 0.10.0
libtpu: 0.0.40
codegen_flags: <defaults>
</compile_context>

<pallas_src>
import jax
import jax.numpy as jnp
from jax.experimental import pallas as pl
from jax.experimental.pallas import tpu as pltpu


def _round_up(x, m):
    return ((x + m - 1) // m) * m


def _weight_and_sum_kernel(w_ref, b_ref, feats_ref, smask_ref, seg_ref,
                           hsum_ref, wout_ref, acc_ref):
    i = pl.program_id(1)                 # node-tile index within this core's half

    @pl.when(i == 0)
    def _zero_acc():
        acc_ref[...] = jnp.zeros_like(acc_ref)

    feats = feats_ref[...]               # (TN, D) f32
    b_pad = acc_ref.shape[0]
    tn = feats.shape[0]

    # Lane-dense logits row: (1, D) . (TN, D)^T -> (1, TN) on the MXU.
    logits = jax.lax.dot_general(
        w_ref[...], feats,
        dimension_numbers=(((1,), (1,)), ((), ())),
        preferred_element_type=jnp.float32) + b_ref[0]              # (1, TN)
    weight_row = (1.0 / (1.0 + jnp.exp(-logits))) * smask_ref[...]  # (1, TN)
    wout_ref[...] = weight_row.astype(wout_ref.dtype)

    # Per-graph one-hot rebuilt on the fly (padded nodes carry segment id -1,
    # so they match no graph row and contribute nothing).
    graph_ids = jax.lax.broadcasted_iota(jnp.int32, (b_pad, tn), 0)
    seg_w = jnp.where(seg_ref[...] == graph_ids, weight_row, 0.0)   # (B_pad, TN)

    # Weighted segment sum for this tile on the MXU, accumulated in f32.
    acc_ref[...] += jnp.dot(seg_w, feats, preferred_element_type=jnp.float32)

    @pl.when(i == pl.num_programs(1) - 1)
    def _writeback():
        hsum_ref[...] = acc_ref[...].astype(hsum_ref.dtype)


def weight_and_sum(feats, smask, segment_ids, w_row, bias, num_graphs,
                   *, tile_nodes=512, vmem_limit_bytes=48 * 1024 * 1024):
    """WeightAndSum forward.

    feats:       (N, D) f32 node features
    smask:       (N,) or (N, 1) f32 substructure mask
    segment_ids: (N,) int graph id of every node, in [0, num_graphs)
    w_row:       (1, D) f32 nn.Linear(in_feats, 1) weight
    bias:        (1,) f32 nn.Linear(in_feats, 1) bias
    Returns (h_g_sum: (num_graphs, D), weight: (N, 1)).
    """
    N, D = feats.shape
    B = int(num_graphs)
    B_pad = max(8, _round_up(B, 8))          # full sublane group for the accumulator

    # Node-tile size: multiple of 128 (lane-dense (1, N) rows), capped so the
    # double-buffered feats tiles stay comfortably inside v7x's 64 MiB VMEM.
    vmem_cap = max(128, ((8 * 1024 * 1024) // (8 * D * 4)) // 128 * 128)
    TN = max(128, min(_round_up(tile_nodes, 128),
                      _round_up((N + 1) // 2, 128),
                      vmem_cap))
    N_pad = _round_up(N, 2 * TN)
    ni = N_pad // (2 * TN)                   # node tiles per core-half

    # Pad / re-layout inputs (padding rows: zero feats, zero mask, segment -1).
    feats_p = jnp.zeros((N_pad, D), feats.dtype).at[:N].set(feats)
    smask_row = jnp.zeros((1, N_pad), feats.dtype).at[0, :N].set(
        smask.reshape(-1).astype(feats.dtype))
    seg_row = jnp.full((1, N_pad), -1, jnp.int32).at[0, :N].set(
        segment_ids.reshape(-1).astype(jnp.int32))
    w_row = w_row.reshape(1, D).astype(feats.dtype)
    bias = bias.reshape(1).astype(jnp.float32)

    cost = pl.CostEstimate(
        flops=2 * N_pad * D * (B_pad + 1),
        transcendentals=N_pad,
        bytes_accessed=4 * (N_pad * D + 3 * N_pad + 2 * B_pad * D + D + 1))

    hsum_part, weight_full = pl.pallas_call(
        _weight_and_sum_kernel,
        out_shape=(jax.ShapeDtypeStruct((2 * B_pad, D), feats.dtype),
                   jax.ShapeDtypeStruct((1, N_pad), feats.dtype)),
        grid=(2, ni),
        in_specs=[
            pl.BlockSpec((1, D), lambda c, i: (0, 0)),             # W row (resident)
            pl.BlockSpec(memory_space=pltpu.MemorySpace.SMEM),     # bias scalar
            pl.BlockSpec((TN, D), lambda c, i: (c * ni + i, 0)),   # feats tile
            pl.BlockSpec((1, TN), lambda c, i: (0, c * ni + i)),   # smask row
            pl.BlockSpec((1, TN), lambda c, i: (0, c * ni + i)),   # segment ids
        ],
        out_specs=(
            pl.BlockSpec((B_pad, D), lambda c, i: (c, 0)),         # per-core partial
            pl.BlockSpec((1, TN), lambda c, i: (0, c * ni + i)),   # weight row
        ),
        scratch_shapes=[pltpu.VMEM((B_pad, D), jnp.float32)],
        compiler_params=pltpu.CompilerParams(
            dimension_semantics=("parallel", "arbitrary"),
            vmem_limit_bytes=vmem_limit_bytes),
        cost_estimate=cost,
    )(w_row, bias, feats_p, smask_row, seg_row)

    h_g_sum = (hsum_part[:B_pad] + hsum_part[B_pad:])[:B]          # sum core halves
    weight = weight_full[0, :N].reshape(N, 1)
    return h_g_sum, weight


if __name__ == "__main__":
    key = jax.random.PRNGKey(0)
    B = 2            # number of molecules (graphs) in the batch
    N = 16           # total number of atoms across all molecules
    D = 32           # in_feats

    k_feats, k_w, k_b, k_mask = jax.random.split(key, 4)
    feats = jax.random.normal(k_feats, (N, D), dtype=jnp.float32)

    # Deterministic parameter init for nn.Linear(in_feats, 1)
    bound = 1.0 / jnp.sqrt(jnp.float32(D))
    w_row = jax.random.uniform(k_w, (1, D), jnp.float32, -bound, bound)   # weight (1, D)
    bias = jax.random.uniform(k_b, (1,), jnp.float32, -bound, bound)      # bias (1,)

    # substructure mask: 0 for atom node, 1 for substructure node, shape (N, 1)
    smask = (jax.random.uniform(k_mask, (N, 1)) > 0.5).astype(jnp.float32)

    # Batched graph: first 7 atoms -> molecule 0, remaining 9 -> molecule 1
    segment_ids = jnp.concatenate([jnp.zeros((7,), jnp.int32),
                                   jnp.ones((9,), jnp.int32)])

    h_g_sum, weight = weight_and_sum(feats, smask, segment_ids, w_row, bias, B)
    jax.block_until_ready((h_g_sum, weight))

    # Pure-JAX reference
    ref_w = (1.0 / (1.0 + jnp.exp(-(feats @ w_row[0] + bias[0]))))[:, None] * smask
    seg_onehot = (segment_ids[None, :] == jnp.arange(B)[:, None]).astype(jnp.float32)
    ref_sum = seg_onehot @ (feats * ref_w)

    assert h_g_sum.shape == (B, D) and weight.shape == (N, 1)
    assert jnp.allclose(weight, ref_w, atol=1e-4, rtol=1e-4)
    assert jnp.allclose(h_g_sum, ref_sum, atol=1e-4, rtol=1e-4)

    print("KERNEL_OK")
</pallas_src>

<mosaic_0001>
module attributes {stable_mosaic.version = 11 : i64} {
  func.func @_weight_and_sum_kernel(%arg0: i32, %arg1: i32, %arg2: memref<1x32xf32, #tpu.memory_space<vmem>>, %arg3: memref<1xf32, #tpu.memory_space<smem>>, %arg4: memref<128x32xf32, #tpu.memory_space<vmem>>, %arg5: memref<1x128xf32, #tpu.memory_space<vmem>>, %arg6: memref<1x128xi32, #tpu.memory_space<vmem>>, %arg7: memref<8x32xf32, #tpu.memory_space<vmem>>, %arg8: memref<1x128xf32, #tpu.memory_space<vmem>>, %arg9: memref<8x32xf32, #tpu.memory_space<vmem>>) attributes {dimension_semantics = [#tpu.dimension_semantics<parallel>, #tpu.dimension_semantics<arbitrary>], iteration_bounds = array<i64: 2, 1>, scalar_prefetch = 0 : i64, scratch_operands = 1 : i64, tpu.core_type = #tpu.core_type<tc>, window_params = [{pipeline_mode = #tpu.pipeline_mode<synchronous>, transform_indices = @transform_0, window_bounds = array<i64: 1, 32>}, {transform_indices = @transform_1, window_bounds = array<i64: 1>}, {transform_indices = @transform_2, window_bounds = array<i64: 128, 32>}, {transform_indices = @transform_3, window_bounds = array<i64: 1, 128>}, {transform_indices = @transform_4, window_bounds = array<i64: 1, 128>}, {transform_indices = @transform_5, window_bounds = array<i64: 8, 32>}, {transform_indices = @transform_6, window_bounds = array<i64: 1, 128>}]} {
    %c0_i32 = arith.constant 0 : i32
    %0 = arith.cmpi eq, %arg1, %c0_i32 : i32
    %1 = arith.extui %0 : i1 to i32
    %c0_i32_0 = arith.constant 0 : i32
    %2 = arith.cmpi ne, %1, %c0_i32_0 : i32
    scf.if %2 {
      %cst_22 = arith.constant 0.000000e+00 : f32
      %34 = vector.broadcast %cst_22 : f32 to vector<8x32xf32>
      %c0_23 = arith.constant 0 : index
      %c0_24 = arith.constant 0 : index
      %35 = vector.load %arg9[%c0_23, %c0_24] : memref<8x32xf32, #tpu.memory_space<vmem>>, vector<8x32xf32>
      tpu.vector_store %arg9[%c0_23, %c0_24], %34 {strides = array<i32>} : memref<8x32xf32, #tpu.memory_space<vmem>>, vector<8x32xf32>,
    } else {
    }
    %c0 = arith.constant 0 : index
    %c0_1 = arith.constant 0 : index
    %3 = vector.load %arg4[%c0, %c0_1] : memref<128x32xf32, #tpu.memory_space<vmem>>, vector<128x32xf32>
    %c0_2 = arith.constant 0 : index
    %c0_3 = arith.constant 0 : index
    %4 = vector.load %arg2[%c0_2, %c0_3] : memref<1x32xf32, #tpu.memory_space<vmem>>, vector<1x32xf32>
    %cst = arith.constant dense<0.000000e+00> : vector<1x128xf32>
    %5 = tpu.matmul %4, %3, %cst {dimension_numbers = #tpu.dot_dimension_numbers<[1], [1], [0], [0], [0, 0, 1, 0], [], []>} : vector<1x32xf32>, vector<128x32xf32>, vector<1x128xf32> -> vector<1x128xf32>
    %c0_4 = arith.constant 0 : index
    %6 = memref.load %arg3[%c0_4] : memref<1xf32, #tpu.memory_space<smem>>
    %7 = vector.broadcast %6 : f32 to vector<1x128xf32>
    %8 = arith.addf %5, %7 : vector<1x128xf32>
    %cst_5 = arith.constant 0.000000e+00 : f32
    %9 = vector.broadcast %cst_5 : f32 to vector<1x128xf32>
    %10 = arith.subf %9, %8 : vector<1x128xf32>
    %11 = math.exp %10 : vector<1x128xf32>
    %cst_6 = arith.constant 1.000000e+00 : f32
    %12 = vector.broadcast %cst_6 : f32 to vector<1x128xf32>
    %13 = arith.addf %12, %11 : vector<1x128xf32>
    %cst_7 = arith.constant 1.000000e+00 : f32
    %14 = vector.broadcast %cst_7 : f32 to vector<1x128xf32>
    %15 = arith.divf %14, %13 : vector<1x128xf32>
    %c0_8 = arith.constant 0 : index
    %c0_9 = arith.constant 0 : index
    %16 = vector.load %arg5[%c0_8, %c0_9] : memref<1x128xf32, #tpu.memory_space<vmem>>, vector<1x128xf32>
    %17 = arith.mulf %15, %16 : vector<1x128xf32>
    %c0_10 = arith.constant 0 : index
    %c0_11 = arith.constant 0 : index
    %18 = vector.load %arg8[%c0_10, %c0_11] : memref<1x128xf32, #tpu.memory_space<vmem>>, vector<1x128xf32>
    tpu.vector_store %arg8[%c0_10, %c0_11], %17 {strides = array<i32>} : memref<1x128xf32, #tpu.memory_space<vmem>>, vector<1x128xf32>,
    %19 = tpu.iota {dimensions = array<i32: 0>} : vector<8x128xi32>
    %c0_12 = arith.constant 0 : index
    %c0_13 = arith.constant 0 : index
    %20 = vector.load %arg6[%c0_12, %c0_13] : memref<1x128xi32, #tpu.memory_space<vmem>>, vector<1x128xi32>
    %21 = vector.broadcast %20 : vector<1x128xi32> to vector<8x128xi32>
    %22 = arith.cmpi eq, %21, %19 : vector<8x128xi32>
    %cst_14 = arith.constant 0.000000e+00 : f32
    %23 = vector.shape_cast %17 : vector<1x128xf32> to vector<1x128xf32>
    %24 = vector.broadcast %23 : vector<1x128xf32> to vector<8x128xf32>
    %25 = vector.broadcast %cst_14 : f32 to vector<8x128xf32>
    %26 = arith.select %22, %24, %25 : vector<8x128xi1>, vector<8x128xf32>
    %c0_15 = arith.constant 0 : index
    %c0_16 = arith.constant 0 : index
    %27 = vector.load %arg9[%c0_15, %c0_16] : memref<8x32xf32, #tpu.memory_space<vmem>>, vector<8x32xf32>
    %cst_17 = arith.constant dense<0.000000e+00> : vector<8x32xf32>
    %28 = tpu.matmul %26, %3, %cst_17 {dimension_numbers = #tpu.dot_dimension_numbers<[1], [0], [0], [1], [0, 0, 1, 1], [], []>} : vector<8x128xf32>, vector<128x32xf32>, vector<8x32xf32> -> vector<8x32xf32>
    %29 = arith.addf %27, %28 : vector<8x32xf32>
    %c0_18 = arith.constant 0 : index
    %c0_19 = arith.constant 0 : index
    %30 = vector.load %arg9[%c0_18, %c0_19] : memref<8x32xf32, #tpu.memory_space<vmem>>, vector<8x32xf32>
    tpu.vector_store %arg9[%c0_18, %c0_19], %29 {strides = array<i32>} : memref<8x32xf32, #tpu.memory_space<vmem>>, vector<8x32xf32>,
    %c0_i32_20 = arith.constant 0 : i32
    %31 = arith.cmpi eq, %arg1, %c0_i32_20 : i32
    %32 = arith.extui %31 : i1 to i32
    %c0_i32_21 = arith.constant 0 : i32
    %33 = arith.cmpi ne, %32, %c0_i32_21 : i32
    scf.if %33 {
      %c0_22 = arith.constant 0 : index
      %c0_23 = arith.constant 0 : index
      %34 = vector.load %arg9[%c0_22, %c0_23] : memref<8x32xf32, #tpu.memory_space<vmem>>, vector<8x32xf32>
      %c0_24 = arith.constant 0 : index
      %c0_25 = arith.constant 0 : index
      %35 = vector.load %arg7[%c0_24, %c0_25] : memref<8x32xf32, #tpu.memory_space<vmem>>, vector<8x32xf32>
      tpu.vector_store %arg7[%c0_24, %c0_25], %34 {strides = array<i32>} : memref<8x32xf32, #tpu.memory_space<vmem>>, vector<8x32xf32>,
    } else {
    }
    return
  }
  func.func @transform_0(%arg0: i32, %arg1: i32) -> (i32, i32) {
    %c0_i32 = arith.constant 0 : i32
    %c0_i32_0 = arith.constant 0 : i32
    %c0_i32_1 = arith.constant 0 : i32
    return %c0_i32, %c0_i32_0 : i32, i32
  }
  func.func @transform_1(%arg0: i32, %arg1: i32) -> i32 {
    %c0_i32 = arith.constant 0 : i32
    %c0_i32_0 = arith.constant 0 : i32
    return %c0_i32 : i32
  }
  func.func @transform_2(%arg0: i32, %arg1: i32) -> (i32, i32) {
    %c1_i32 = arith.constant 1 : i32
    %0 = arith.muli %arg0, %c1_i32 : i32
    %1 = arith.addi %0, %arg1 : i32
    %c0_i32 = arith.constant 0 : i32
    %c0_i32_0 = arith.constant 0 : i32
    return %1, %c0_i32 : i32, i32
  }
  func.func @transform_3(%arg0: i32, %arg1: i32) -> (i32, i32) {
    %c1_i32 = arith.constant 1 : i32
    %0 = arith.muli %arg0, %c1_i32 : i32
    %1 = arith.addi %0, %arg1 : i32
    %c0_i32 = arith.constant 0 : i32
    %c0_i32_0 = arith.constant 0 : i32
    return %c0_i32, %1 : i32, i32
  }
  func.func @transform_4(%arg0: i32, %arg1: i32) -> (i32, i32) {
    %c1_i32 = arith.constant 1 : i32
    %0 = arith.muli %arg0, %c1_i32 : i32
    %1 = arith.addi %0, %arg1 : i32
    %c0_i32 = arith.constant 0 : i32
    %c0_i32_0 = arith.constant 0 : i32
    return %c0_i32, %1 : i32, i32
  }
  func.func @transform_5(%arg0: i32, %arg1: i32) -> (i32, i32) {
    %c0_i32 = arith.constant 0 : i32
    %c0_i32_0 = arith.constant 0 : i32
    return %arg0, %c0_i32 : i32, i32
  }
  func.func @transform_6(%arg0: i32, %arg1: i32) -> (i32, i32) {
    %c1_i32 = arith.constant 1 : i32
    %0 = arith.muli %arg0, %c1_i32 : i32
    %1 = arith.addi %0, %arg1 : i32
    %c0_i32 = arith.constant 0 : i32
    %c0_i32_0 = arith.constant 0 : i32
    return %c0_i32, %1 : i32, i32
  }
}

</mosaic_0001>

<llo_original>
// kernel: tpu_custom_call.1
$region0: #{tpu_custom_call.1}
  #allocation0 [shape = 'u32[]', space=smem, size = 0x4, offset = 0x4, fixed_abs, tag = 'smem constant byte address 0x4 - core index']
  #allocation1 [shape = 'u32[144,128]{1,0:T(1,128)}', space=vmem, size = 0x12000, scoped, tag = 'internal scratch']
  #allocation2 [shape = 'f32[8,32]{1,0:T(8,128)}', space=vmem, size = 0x1000, scoped, tag = 'scratch operand']
  #allocation3 [shape = 'f32[1]{0:T(128)S(6)}', space=smem, size = 0x200, scoped, tag = 'scoped memory for tpu_custom_call.1']
  %s0 = inlined_call_operand.vmem [shape: f32[1,32], index: 0, kind: input, shape index: {}]
  %s1 = inlined_call_operand.<no memory space> [shape: f32[1], index: 1, kind: input, shape index: {}]
  %s2 = inlined_call_operand.vmem [shape: f32[256,32], index: 2, kind: input, shape index: {}]
  %s3 = inlined_call_operand.vmem [shape: f32[1,256], index: 3, kind: input, shape index: {}]
  %s4 = inlined_call_operand.vmem [shape: s32[1,256], index: 4, kind: input, shape index: {}]
  %s5 = inlined_call_operand.hbm [shape: f32[16,32], index: 5, kind: output, shape index: {0}]
  %s6 = inlined_call_operand.hbm [shape: f32[1,256], index: 6, kind: output, shape index: {1}]
  %7 = xla_tuple %s5, %s6
  %s8 = sld [smem:[#allocation0]]
  $region69: #{tpu_custom_call.1} parent=0
    _
  %s10 = ssub.s32 1, %s8
  %s11 = scalar_select 0, %s10, %s8
  %12 = sst [smem:[#allocation3]] %s1
  $region1: #{tpu_custom_call.1} parent=0
    #allocation4 [shape = 'u8[8192]{0}', space=vmem, size = 0x2000, scoped, tag = 'output window, operand 0']
    #allocation5 [shape = 's32[2]{0}', space=sflag, size = 0x8, scoped, tag = 'scoped memory for tpu_custom_call.1']
    #allocation6 [shape = 'u8[1024]{0}', space=vmem, size = 0x400, scoped, tag = 'output window, operand 1']
    #allocation7 [shape = 's32[2]{0}', space=sflag, size = 0x8, scoped, tag = 'scoped memory for tpu_custom_call.1']
    %13 = vsyncpa [#allocation5], 0
    %s14 = scalar_lea.sflag [#allocation5], 1
    %15 = vsyncpa %s14, 0
    %16 = vsyncpa [#allocation7], 0
    %s17 = scalar_lea.sflag [#allocation7], 1
    %18 = vsyncpa %s17, 0
    loop: start=0, step=1, limit=4
    $region2: #{tpu_custom_call.1} parent=1 // loop_pre_header
      _
    $region3: #{tpu_custom_call.1} parent=1 // loop_header
      %s20 = sphi 0, %s24
      %p21 = scmp.ge.s32.totalorder %s20, 4
      %s27 = sphi 0, %s39
      %s28 = sphi 0, %s35
      %s29 = sphi 0, %s27
      %s30 = sphi 0, %s28
      %s31 = sphi 0, %s29
      %s32 = sphi 0, %s30
      %s40 = sphi 0, %s40
      %s42 = sphi 0, %s40
      %s43 = sphi 0, %s42
      %s57 = sphi 0, %s43
      %s61 = sphi 0, %s61
      %s63 = sphi 0, %s61
      %s64 = sphi 0, %s63
      %s78 = sphi 0, %s64
      %s86 = sphi 0, %s88
      %s89 = sphi 0, %s86
      %s90 = sphi 0, %s89
      %s106 = sphi 0, %s90
      %s114 = sphi 0, %s116
      %s117 = sphi 0, %s114
      %s118 = sphi 0, %s117
      %s134 = sphi 0, %s118
      %s142 = sphi 0, %s144
      %s145 = sphi 0, %s142
      %s146 = sphi 0, %s145
      %s162 = sphi 0, %s146
      %s168 = sphi 0, %s170
      %s171 = sphi 0, %s168
      %s172 = sphi 0, %s171
      %s188 = sphi 0, %s172
      %s196 = sphi 0, %s198
      %s199 = sphi 0, %s196
      %s200 = sphi 0, %s199
      %s216 = sphi 0, %s200
    $region4: #{tpu_custom_call.1} parent=1 // loop_header_branch
      %23 = sbr.rel (%p21) target = $region8
    $region5: #{tpu_custom_call.1} parent=1 // loop_body
      %s25 = ssub.s32 %s20, 1
      %s26 = ssub.s32 %s20, 2
      %s33 = sadd.s32 1, %s28
      %p34 = scmp.ge.s32.totalorder %s33, 1
      %s35 = scalar_select %p34, 0, %s33
      %s36 = sadd.s32 1, %s27
      %s37 = scalar_select %p34, %s36, %s27
      %p38 = scmp.ge.s32.totalorder %s37, 2
      %s39 = scalar_select %p38, 0, %s37
      %s41 = sadd.s32 %s40, 1
      %p44 = scmp.eq.s32.totalorder %s20, 1
      %p45 = scmp.ne.s32.totalorder %s40, %s42
      %p46 = scmp.eq.s32.totalorder %s20, 0
      %p47 = por %p45, %p46
      %p48 = scmp.ne.s32.totalorder %s40, %s42
      %p49 = scmp.eq.s32.totalorder %s25, 1
      %p50 = por %p48, %p49
      %p51 = scmp.ne.s32.totalorder %s42, %s43
      %p52 = scmp.eq.s32.totalorder %s25, 0
      %p53 = por %p51, %p52
      %p54 = scmp.ne.s32.totalorder %s42, %s43
      %p55 = scmp.eq.s32.totalorder %s26, 1
      %p56 = por %p54, %p55
      %p58 = scmp.ne.s32.totalorder %s43, %s57
      %p59 = scmp.eq.s32.totalorder %s26, 0
      %p60 = por %p58, %p59
      %s62 = sadd.s32 %s61, 1
      %p65 = scmp.eq.s32.totalorder %s20, 1
      %p66 = scmp.ne.s32.totalorder %s61, %s63
      %p67 = scmp.eq.s32.totalorder %s20, 0
      %p68 = por %p66, %p67
      %p69 = scmp.ne.s32.totalorder %s61, %s63
      %p70 = scmp.eq.s32.totalorder %s25, 1
      %p71 = por %p69, %p70
      %p72 = scmp.ne.s32.totalorder %s63, %s64
      %p73 = scmp.eq.s32.totalorder %s25, 0
      %p74 = por %p72, %p73
      %p75 = scmp.ne.s32.totalorder %s63, %s64
      %p76 = scmp.eq.s32.totalorder %s26, 1
      %p77 = por %p75, %p76
      %p79 = scmp.ne.s32.totalorder %s64, %s78
      %p80 = scmp.eq.s32.totalorder %s26, 0
      %p81 = por %p79, %p80
      %s82 = sadd.s32 %s27, %s28
      %s83 = sadd.s32 %s39, %s35
      %s84 = ssub.s32 %s82, %s83
      %p85 = scmp.eq.s32.totalorder %s84, 0
      %s87 = sadd.s32 %s86, 1
      %s88 = scalar_select %p85, %s86, %s87
      %p91 = pneg %p85
      %p92 = scmp.eq.s32.totalorder %s20, 1
      %p93 = por %p91, %p92
      %p94 = scmp.ne.s32.totalorder %s86, %s89
      %p95 = scmp.eq.s32.totalorder %s20, 0
      %p96 = por %p94, %p95
      %p97 = scmp.ne.s32.totalorder %s86, %s89
      %p98 = scmp.eq.s32.totalorder %s25, 1
      %p99 = por %p97, %p98
      %p100 = scmp.ne.s32.totalorder %s89, %s90
      %p101 = scmp.eq.s32.totalorder %s25, 0
      %p102 = por %p100, %p101
      %p103 = scmp.ne.s32.totalorder %s89, %s90
      %p104 = scmp.eq.s32.totalorder %s26, 1
      %p105 = por %p103, %p104
      %p107 = scmp.ne.s32.totalorder %s90, %s106
      %p108 = scmp.eq.s32.totalorder %s26, 0
      %p109 = por %p107, %p108
      %s110 = sadd.s32 %s27, %s28
      %s111 = sadd.s32 %s39, %s35
      %s112 = ssub.s32 %s110, %s111
      %p113 = scmp.eq.s32.totalorder %s112, 0
      %s115 = sadd.s32 %s114, 1
      %s116 = scalar_select %p113, %s114, %s115
      %p119 = pneg %p113
      %p120 = scmp.eq.s32.totalorder %s20, 1
      %p121 = por %p119, %p120
      %p122 = scmp.ne.s32.totalorder %s114, %s117
      %p123 = scmp.eq.s32.totalorder %s20, 0
      %p124 = por %p122, %p123
      %p125 = scmp.ne.s32.totalorder %s114, %s117
      %p126 = scmp.eq.s32.totalorder %s25, 1
      %p127 = por %p125, %p126
      %p128 = scmp.ne.s32.totalorder %s117, %s118
      %p129 = scmp.eq.s32.totalorder %s25, 0
      %p130 = por %p128, %p129
      %p131 = scmp.ne.s32.totalorder %s117, %s118
      %p132 = scmp.eq.s32.totalorder %s26, 1
      %p133 = por %p131, %p132
      %p135 = scmp.ne.s32.totalorder %s118, %s134
      %p136 = scmp.eq.s32.totalorder %s26, 0
      %p137 = por %p135, %p136
      %s138 = sadd.s32 %s27, %s28
      %s139 = sadd.s32 %s39, %s35
      %s140 = ssub.s32 %s138, %s139
      %p141 = scmp.eq.s32.totalorder %s140, 0
      %s143 = sadd.s32 %s142, 1
      %s144 = scalar_select %p141, %s142, %s143
      %p147 = pneg %p141
      %p148 = scmp.eq.s32.totalorder %s20, 1
      %p149 = por %p147, %p148
      %p150 = scmp.ne.s32.totalorder %s142, %s145
      %p151 = scmp.eq.s32.totalorder %s20, 0
      %p152 = por %p150, %p151
      %p153 = scmp.ne.s32.totalorder %s142, %s145
      %p154 = scmp.eq.s32.totalorder %s25, 1
      %p155 = por %p153, %p154
      %p156 = scmp.ne.s32.totalorder %s145, %s146
      %p157 = scmp.eq.s32.totalorder %s25, 0
      %p158 = por %p156, %p157
      %p159 = scmp.ne.s32.totalorder %s145, %s146
      %p160 = scmp.eq.s32.totalorder %s26, 1
      %p161 = por %p159, %p160
      %p163 = scmp.ne.s32.totalorder %s146, %s162
      %p164 = scmp.eq.s32.totalorder %s26, 0
      %p165 = por %p163, %p164
      %s166 = ssub.s32 %s27, %s39
      %p167 = scmp.eq.s32.totalorder %s166, 0
      %s169 = sadd.s32 %s168, 1
      %s170 = scalar_select %p167, %s168, %s169
      %p173 = pneg %p167
      %p174 = scmp.eq.s32.totalorder %s20, 1
      %p175 = por %p173, %p174
      %p176 = scmp.ne.s32.totalorder %s168, %s171
      %p177 = scmp.eq.s32.totalorder %s20, 0
      %p178 = por %p176, %p177
      %p179 = scmp.ne.s32.totalorder %s168, %s171
      %p180 = scmp.eq.s32.totalorder %s25, 1
      %p181 = por %p179, %p180
      %p182 = scmp.ne.s32.totalorder %s171, %s172
      %p183 = scmp.eq.s32.totalorder %s25, 0
      %p184 = por %p182, %p183
      %p185 = scmp.ne.s32.totalorder %s171, %s172
      %p186 = scmp.eq.s32.totalorder %s26, 1
      %p187 = por %p185, %p186
      %p189 = scmp.ne.s32.totalorder %s172, %s188
      %p190 = scmp.eq.s32.totalorder %s26, 0
      %p191 = por %p189, %p190
      %s192 = sadd.s32 %s27, %s28
      %s193 = sadd.s32 %s39, %s35
      %s194 = ssub.s32 %s192, %s193
      %p195 = scmp.eq.s32.totalorder %s194, 0
      %s197 = sadd.s32 %s196, 1
      %s198 = scalar_select %p195, %s196, %s197
      %p201 = pneg %p195
      %p202 = scmp.eq.s32.totalorder %s20, 1
      %p203 = por %p201, %p202
      %p204 = scmp.ne.s32.totalorder %s196, %s199
      %p205 = scmp.eq.s32.totalorder %s20, 0
      %p206 = por %p204, %p205
      %p207 = scmp.ne.s32.totalorder %s196, %s199
      %p208 = scmp.eq.s32.totalorder %s25, 1
      %p209 = por %p207, %p208
      %p210 = scmp.ne.s32.totalorder %s199, %s200
      %p211 = scmp.eq.s32.totalorder %s25, 0
      %p212 = por %p210, %p211
      %p213 = scmp.ne.s32.totalorder %s199, %s200
      %p214 = scmp.eq.s32.totalorder %s26, 1
      %p215 = por %p213, %p214
      %p217 = scmp.ne.s32.totalorder %s200, %s216
      %p218 = scmp.eq.s32.totalorder %s26, 0
      %p219 = por %p217, %p218
      %p220 = scmp.le.s32.totalorder 1, %s20
      %p221 = scmp.lt.s32.totalorder %s20, 3
      %p222 = pnand %p220, %p221
      %p223 = pneg %p222
      // Predicated region
      $region9: #{tpu_custom_call.1} parent=5 // pred_check
        _
      $region10: #{tpu_custom_call.1} parent=5 // pred_check_branch
        %225 = sbr.rel (%p222) target = $region12
      $region11: #{tpu_custom_call.1} parent=5 // pred_region
        %s226 = ssub.s32 %s20, 1
        // Predicated region
        $region13: #{tpu_custom_call.1} parent=11 // pred_check
          %p227 = pneg %p53
        $region14: #{tpu_custom_call.1} parent=11 // pred_check_branch
          %229 = sbr.rel (%p227) target = $region16
        $region15: #{tpu_custom_call.1} parent=11 // pred_region
          _
        $region16: #{tpu_custom_call.1} parent=11 // pred_fallthru
          _
        // Predicated region
        $region17: #{tpu_custom_call.1} parent=11 // pred_check
          %p230 = pneg %p74
        $region18: #{tpu_custom_call.1} parent=11 // pred_check_branch
          %232 = sbr.rel (%p230) target = $region20
        $region19: #{tpu_custom_call.1} parent=11 // pred_region
          _
        $region20: #{tpu_custom_call.1} parent=11 // pred_fallthru
          _
      $region12: #{tpu_custom_call.1} parent=5 // pred_fallthru
        _
      %p233 = scmp.lt.s32.totalorder %s20, 2
      // Predicated region
      $region21: #{tpu_custom_call.1} parent=5 // pred_check
        %p234 = pneg %p233
      $region22: #{tpu_custom_call.1} parent=5 // pred_check_branch
        %236 = sbr.rel (%p234) target = $region24
      $region23: #{tpu_custom_call.1} parent=5 // pred_region
        // Predicated region
        $region25: #{tpu_custom_call.1} parent=23 // pred_check
          %p237 = pneg %p96
        $region26: #{tpu_custom_call.1} parent=23 // pred_check_branch
          %239 = sbr.rel (%p237) target = $region28
        $region27: #{tpu_custom_call.1} parent=23 // pred_region
          %s240 = sadd.s32 %s27, %s28
          %s241 = smul.u32 16, %s240
          %p242 = scmp.lt.s32.totalorder %s241, 31
          %s243 = scalar_select %p242, %s241, 31
          %s244 = smul.addr %s243, 8
          %s245 = scalar_lea.vmem %s2, %s244
          %s246 = sadd.s32 %s27, %s28
          %s247 = smul.u32 16, %s246
        $region28: #{tpu_custom_call.1} parent=23 // pred_fallthru
          _
        // Predicated region
        $region29: #{tpu_custom_call.1} parent=23 // pred_check
          %p248 = pneg %p124
        $region30: #{tpu_custom_call.1} parent=23 // pred_check_branch
          %250 = sbr.rel (%p248) target = $region32
        $region31: #{tpu_custom_call.1} parent=23 // pred_region
          %s251 = sadd.s32 %s27, %s28
          %p252 = scmp.lt.s32.totalorder %s251, 1
          %s253 = scalar_select %p252, %s251, 1
          %s254 = scalar_lea.vmem %s3, %s253
          %s255 = sadd.s32 %s27, %s28
        $region32: #{tpu_custom_call.1} parent=23 // pred_fallthru
          _
        // Predicated region
        $region33: #{tpu_custom_call.1} parent=23 // pred_check
          %p256 = pneg %p152
        $region34: #{tpu_custom_call.1} parent=23 // pred_check_branch
          %258 = sbr.rel (%p256) target = $region36
        $region35: #{tpu_custom_call.1} parent=23 // pred_region
          %s259 = sadd.s32 %s27, %s28
          %p260 = scmp.lt.s32.totalorder %s259, 1
          %s261 = scalar_select %p260, %s259, 1
          %s262 = scalar_lea.vmem %s4, %s261
          %s263 = sadd.s32 %s27, %s28
        $region36: #{tpu_custom_call.1} parent=23 // pred_fallthru
          _
      $region24: #{tpu_custom_call.1} parent=5 // pred_fallthru
        _
      %p264 = scmp.le.s32.totalorder 1, %s20
      %p265 = scmp.lt.s32.totalorder %s20, 3
      %p266 = pnand %p264, %p265
      %p267 = pneg %p266
      // Predicated region
      $region37: #{tpu_custom_call.1} parent=5 // pred_check
        _
      $region38: #{tpu_custom_call.1} parent=5 // pred_check_branch
        %269 = sbr.rel (%p266) target = $region40
      $region39: #{tpu_custom_call.1} parent=5 // pred_region
        %s270 = ssub.s32 %s20, 1
        %p271 = pneg %p53
        %p272 = pneg %p50
        %p273 = pneg %p74
        %p274 = pneg %p71
        %s275 = sadd.s32 %s29, %s30
        %s276 = smul.u32 16, %s275
        %p277 = scmp.lt.s32.totalorder %s276, 31
        %s278 = scalar_select %p277, %s276, 31
        %s279 = smul.addr %s278, 8
        %s280 = scalar_lea.vmem %s2, %s279
        %p281 = pneg %p102
        %p282 = pneg %p99
        %s283 = sadd.s32 %s29, %s30
        %p284 = scmp.lt.s32.totalorder %s283, 1
        %s285 = scalar_select %p284, %s283, 1
        %s286 = scalar_lea.vmem %s3, %s285
        %p287 = pneg %p130
        %p288 = pneg %p127
        %s289 = sadd.s32 %s29, %s30
        %p290 = scmp.lt.s32.totalorder %s289, 1
        %s291 = scalar_select %p290, %s289, 1
        %s292 = scalar_lea.vmem %s4, %s291
        %p293 = pneg %p158
        %p294 = pneg %p155
        %p295 = pneg %p184
        %p296 = pneg %p181
        %s297 = sand.u32 %s171, 1
        %s298 = scalar_lea.sflag [#allocation5], %s297
        %s299 = sand.u32 %s171, 1
        %s300 = smul.addr %s299, 8
        %s301 = scalar_lea.vmem [#allocation4], %s300
        %p302 = pneg %p212
        %p303 = pneg %p209
        %s304 = sand.u32 %s199, 1
        %s305 = scalar_lea.sflag [#allocation7], %s304
        %s306 = sand.u32 %s199, 1
        %s307 = scalar_lea.vmem [#allocation6], %s306
        %s308 = sadd.s32 %s29, %s30
        %s309 = smul.u32 16, %s308
        %p310 = scmp.lt.s32.totalorder %s309, 31
        %s311 = scalar_select %p310, %s309, 31
        %s312 = smul.addr %s311, 8
        %s313 = scalar_lea.vmem %s2, %s312
        %s314 = sadd.s32 %s29, %s30
        %s315 = smul.u32 16, %s314
        %s316 = sadd.s32 %s29, %s30
        %p317 = scmp.lt.s32.totalorder %s316, 1
        %s318 = scalar_select %p317, %s316, 1
        %s319 = scalar_lea.vmem %s3, %s318
        %s320 = sadd.s32 %s29, %s30
        %s321 = sadd.s32 %s29, %s30
        %p322 = scmp.lt.s32.totalorder %s321, 1
        %s323 = scalar_select %p322, %s321, 1
        %s324 = scalar_lea.vmem %s4, %s323
        %s325 = sadd.s32 %s29, %s30
        %s326 = sadd.s32 %s29, %s30
        %p327 = scmp.eq.s32.totalorder %s30, 0
        // Predicated region
        $region41: #{tpu_custom_call.1} parent=39 // pred_check
          %p328 = pneg %p327
        $region42: #{tpu_custom_call.1} parent=39 // pred_check_branch
          %330 = sbr.rel (%p328) target = $region44
        $region43: #{tpu_custom_call.1} parent=39 // pred_region
          %vm331 = vcmask 261120
          %332 = vst.msk [vmem:[#allocation2] sm:$0xff] %vm331, 0.0
        $region44: #{tpu_custom_call.1} parent=39 // pred_fallthru
          _
        %v333 = vld [vmem:[%s313] sm:$0xff]
        %v334 = vld [vmem:[%s313 + $0x8] sm:$0xff]
        %v335 = vld [vmem:[%s313 + $0x10] sm:$0xff]
        %v336 = vld [vmem:[%s313 + $0x18] sm:$0xff]
        %v337 = vld [vmem:[%s313 + $0x20] sm:$0xff]
        %v338 = vld [vmem:[%s313 + $0x28] sm:$0xff]
        %v339 = vld [vmem:[%s313 + $0x30] sm:$0xff]
        %v340 = vld [vmem:[%s313 + $0x38] sm:$0xff]
        %v341 = vld [vmem:[%s313 + $0x40] sm:$0xff]
        %v342 = vld [vmem:[%s313 + $0x48] sm:$0xff]
        %v343 = vld [vmem:[%s313 + $0x50] sm:$0xff]
        %v344 = vld [vmem:[%s313 + $0x58] sm:$0xff]
        %v345 = vld [vmem:[%s313 + $0x60] sm:$0xff]
        %v346 = vld [vmem:[%s313 + $0x68] sm:$0xff]
        %v347 = vld [vmem:[%s313 + $0x70] sm:$0xff]
        %v348 = vld [vmem:[%s313 + $0x78] sm:$0xff]
        %v349 = vld [vmem:[%s0] sm:$0x1]
        %s350 = sld [smem:[#allocation3]]
        %v351 = vstv %s350
        %vm352 = vcmask 261120
        %v354 = vsel %vm352, %v349, 0
        %v357 = vsel %vm352, %v333, 0
        %v360 = vsel %vm352, %v334, 0
        %v363 = vsel %vm352, %v335, 0
        %v366 = vsel %vm352, %v336, 0
        %v369 = vsel %vm352, %v337, 0
        %v372 = vsel %vm352, %v338, 0
        %v375 = vsel %vm352, %v339, 0
        %v378 = vsel %vm352, %v340, 0
        %v381 = vsel %vm352, %v341, 0
        %v384 = vsel %vm352, %v342, 0
        %v387 = vsel %vm352, %v343, 0
        %v390 = vsel %vm352, %v344, 0
        %v393 = vsel %vm352, %v345, 0
        %v396 = vsel %vm352, %v346, 0
        %v399 = vsel %vm352, %v347, 0
        %v402 = vsel %vm352, %v348, 0
        %404 = vmatprep.subr.mxu0 0.0
        %405 = vmatpush1.xpose.msra.mxu0 %v357
        %406 = vmatprep.subr.mxu0 0.0
        %407 = vmatpush1.xpose.msra.mxu0 %v360
        %408 = vmatprep.subr.mxu0 0.0
        %409 = vmatpush1.xpose.msra.mxu0 %v363
        %410 = vmatprep.subr.mxu0 0.0
        %411 = vmatpush1.xpose.msra.mxu0 %v366
        %412 = vmatprep.subr.mxu0 0.0
        %413 = vmatpush1.xpose.msra.mxu0 %v369
        %414 = vmatprep.subr.mxu0 0.0
        %415 = vmatpush1.xpose.msra.mxu0 %v372
        %416 = vmatprep.subr.mxu0 0.0
        %417 = vmatpush1.xpose.msra.mxu0 %v375
        %418 = vmatprep.subr.mxu0 0.0
        %419 = vmatpush1.xpose.msra.mxu0 %v378
        %420 = vmatprep.subr.mxu0 0.0
        %421 = vmatpush1.xpose.msra.mxu0 %v381
        %422 = vmatprep.subr.mxu0 0.0
        %423 = vmatpush1.xpose.msra.mxu0 %v384
        %424 = vmatprep.subr.mxu0 0.0
        %425 = vmatpush1.xpose.msra.mxu0 %v387
        %426 = vmatprep.subr.mxu0 0.0
        %427 = vmatpush1.xpose.msra.mxu0 %v390
        %428 = vmatprep.subr.mxu0 0.0
        %429 = vmatpush1.xpose.msra.mxu0 %v393
        %430 = vmatprep.subr.mxu0 0.0
        %431 = vmatpush1.xpose.msra.mxu0 %v396
        %432 = vmatprep.subr.mxu0 0.0
        %433 = vmatpush1.xpose.msra.mxu0 %v399
        %434 = vmatprep.subr.mxu0 0.0
        %435 = vmatpush1.xpose.msra.mxu0 %v402
        %436 = vmatprep.subr.mxu0 0.0
        %437 = vmatpush1.xpose.msra.mxu0 0.0
        %438 = vmatprep.subr.mxu0 0.0
        %439 = vmatpush1.xpose.msra.mxu0 0.0
        %440 = vmatprep.subr.mxu0 0.0
        %441 = vmatpush1.xpose.msra.mxu0 0.0
        %442 = vmatprep.subr.mxu0 0.0
        %443 = vmatpush1.xpose.msra.mxu0 0.0
        %444 = vmatprep.subr.mxu0 0.0
        %445 = vmatpush1.xpose.msra.mxu0 0.0
        %446 = vmatprep.subr.mxu0 0.0
        %447 = vmatpush1.xpose.msra.mxu0 0.0
        %448 = vmatprep.subr.mxu0 0.0
        %449 = vmatpush1.xpose.msra.mxu0 0.0
        %450 = vmatprep.subr.mxu0 0.0
        %451 = vmatpush1.xpose.msra.mxu0 0.0
        %452 = vmatprep.subr.mxu0 0.0
        %453 = vmatpush1.xpose.msra.mxu0 0.0
        %454 = vmatprep.subr.mxu0 0.0
        %455 = vmatpush1.xpose.msra.mxu0 0.0
        %456 = vmatprep.subr.mxu0 0.0
        %457 = vmatpush1.xpose.msra.mxu0 0.0
        %458 = vmatprep.subr.mxu0 0.0
        %459 = vmatpush1.xpose.msra.mxu0 0.0
        %460 = vmatprep.subr.mxu0 0.0
        %461 = vmatpush1.xpose.msra.mxu0 0.0
        %462 = vmatprep.subr.mxu0 0.0
        %463 = vmatpush1.xpose.msra.mxu0 0.0
        %464 = vmatprep.subr.mxu0 0.0
        %465 = vmatpush1.xpose.msra.mxu0 0.0
        %466 = vmatprep.subr.mxu0 0.0
        %467 = vmatpush1.xpose.msra.mxu0 0.0
        %468 = vmatprep.mubr.f32.mxu0 0.0
        %469 = vmatmul.mubr.f32.gmra.mrb[0].mxu0 %v354
        %v470 = vpop.f32.mrb[0].mxu0
        %v471 = vadd.f32 %v351, %v470
        %v472 = vpop.f32.mrb[0].mxu0
        %473 = vdwg.mxu0
        %v474 = vsub.f32 0.0, %v471
        %v475 = vmul.f32 %v474, 1.442695
        %v476 = vpow.pop %v475
        %v477 = vadd.f32 %v476, 1.0
        %v478 = vrcp.pop %v477
        %v479 = vmul.f32 1.0, %v478
        %v480 = vld [vmem:[%s319] sm:$0x1]
        %v481 = vmul.f32 %v479, %v480
        %482 = vst [vmem:[%s307] sm:$0x1] %v481
        %v483 = vlaneseq
        %v484 = vshrl.u32 %v483, 7
        %v485 = vld [vmem:[%s324] sm:$0x1]
        %v486 = vlaneseq
        %v487 = vshrl.u32 %v486, 7
        %v488 = vsub.s32 0, %v487
        %v489 = vrot.slane %v485, %v488
        %vm490 = vcmp.eq.s32.totalorder %v489, %v484
        %v491 = vlaneseq
        %v492 = vshrl.u32 %v491, 7
        %v493 = vsub.s32 0, %v492
        %v494 = vrot.slane %v481, %v493
        %v495 = vsel %vm490, %v494, 0.0
        %v496 = vld [vmem:[#allocation2] sm:$0xff]
        %497 = vmatprep.subr.mxu0 0.0
        %498 = vmatpush1.msra.mxu0 %v333
        %499 = vmatprep.subr.mxu0 0.0
        %500 = vmatpush1.msra.mxu0 %v334
        %501 = vmatprep.subr.mxu0 0.0
        %502 = vmatpush1.msra.mxu0 %v335
        %503 = vmatprep.subr.mxu0 0.0
        %504 = vmatpush1.msra.mxu0 %v336
        %505 = vmatprep.subr.mxu0 0.0
        %506 = vmatpush1.msra.mxu0 %v337
        %507 = vmatprep.subr.mxu0 0.0
        %508 = vmatpush1.msra.mxu0 %v338
        %509 = vmatprep.subr.mxu0 0.0
        %510 = vmatpush1.msra.mxu0 %v339
        %511 = vmatprep.subr.mxu0 0.0
        %512 = vmatpush1.msra.mxu0 %v340
        %513 = vmatprep.subr.mxu0 0.0
        %514 = vmatpush1.msra.mxu0 %v341
        %515 = vmatprep.subr.mxu0 0.0
        %516 = vmatpush1.msra.mxu0 %v342
        %517 = vmatprep.subr.mxu0 0.0
        %518 = vmatpush1.msra.mxu0 %v343
        %519 = vmatprep.subr.mxu0 0.0
        %520 = vmatpush1.msra.mxu0 %v344
        %521 = vmatprep.subr.mxu0 0.0
        %522 = vmatpush1.msra.mxu0 %v345
        %523 = vmatprep.subr.mxu0 0.0
        %524 = vmatpush1.msra.mxu0 %v346
        %525 = vmatprep.subr.mxu0 0.0
        %526 = vmatpush1.msra.mxu0 %v347
        %527 = vmatprep.subr.mxu0 0.0
        %528 = vmatpush1.msra.mxu0 %v348
        %529 = vmatprep.subr.mxu0 0.0
        %530 = vmatpush1.msra.mxu0 0.0
        %531 = vmatprep.subr.mxu0 0.0
        %532 = vmatpush1.msra.mxu0 0.0
        %533 = vmatprep.subr.mxu0 0.0
        %534 = vmatpush1.msra.mxu0 0.0
        %535 = vmatprep.subr.mxu0 0.0
        %536 = vmatpush1.msra.mxu0 0.0
        %537 = vmatprep.subr.mxu0 0.0
        %538 = vmatpush1.msra.mxu0 0.0
        %539 = vmatprep.subr.mxu0 0.0
        %540 = vmatpush1.msra.mxu0 0.0
        %541 = vmatprep.subr.mxu0 0.0
        %542 = vmatpush1.msra.mxu0 0.0
        %543 = vmatprep.subr.mxu0 0.0
        %544 = vmatpush1.msra.mxu0 0.0
        %545 = vmatprep.subr.mxu0 0.0
        %546 = vmatpush1.msra.mxu0 0.0
        %547 = vmatprep.subr.mxu0 0.0
        %548 = vmatpush1.msra.mxu0 0.0
        %549 = vmatprep.subr.mxu0 0.0
        %550 = vmatpush1.msra.mxu0 0.0
        %551 = vmatprep.subr.mxu0 0.0
        %552 = vmatpush1.msra.mxu0 0.0
        %553 = vmatprep.subr.mxu0 0.0
        %554 = vmatpush1.msra.mxu0 0.0
        %555 = vmatprep.subr.mxu0 0.0
        %556 = vmatpush1.msra.mxu0 0.0
        %557 = vmatprep.subr.mxu0 0.0
        %558 = vmatpush1.msra.mxu0 0.0
        %559 = vmatprep.subr.mxu0 0.0
        %560 = vmatpush1.msra.mxu0 0.0
        %561 = vmatprep.mubr.f32.mxu0 0.0
        %562 = vmatmul.mubr.f32.gmra.mrb[0].mxu0 %v495
        %v563 = vpop.f32.mrb[0].mxu0
        %v564 = vadd.f32 0.0, %v563
        %v565 = vpop.f32.mrb[0].mxu0
        %566 = vdwg.mxu0
        %v567 = vadd.f32 %v496, %v564
        %568 = vst.msk [vmem:[#allocation2] sm:$0xff] %vm352, %v567
        // Predicated region
        $region45: #{tpu_custom_call.1} parent=39 // pred_check
          %p569 = pneg %p327
        $region46: #{tpu_custom_call.1} parent=39 // pred_check_branch
          %571 = sbr.rel (%p569) target = $region48
        $region47: #{tpu_custom_call.1} parent=39 // pred_region
          %v572 = vld [vmem:[#allocation2] sm:$0xff]
          %573 = vst.msk [vmem:[%s301] sm:$0xff] %vm352, %v572
        $region48: #{tpu_custom_call.1} parent=39 // pred_fallthru
          _
        %s574 = sand.u32 %s171, 1
        %s575 = scalar_lea.sflag [#allocation5], %s574
        %s576 = sand.u32 %s171, 1
        %s577 = smul.addr %s576, 8
        %s578 = scalar_lea.vmem [#allocation4], %s577
        %s579 = sand.u32 %s199, 1
        %s580 = scalar_lea.sflag [#allocation7], %s579
        %s581 = sand.u32 %s199, 1
        %s582 = scalar_lea.vmem [#allocation6], %s581
        // Predicated region
        $region49: #{tpu_custom_call.1} parent=39 // pred_check
          %p583 = pneg %p181
        $region50: #{tpu_custom_call.1} parent=39 // pred_check_branch
          %585 = sbr.rel (%p583) target = $region52
        $region51: #{tpu_custom_call.1} parent=39 // pred_region
          %s587 = ssub.s32 128, 128
          %588 = vsyncadd %s575, %s587
          %s589 = smul.addr %s29, 128
          %s590 = scalar_lea.hbm %s5, %s589
          %s592 = sshll.u32 %s578, 4
          %s593 = int_to_ptr.vmem [resolvable:$true] %s592
          %595 = dma.vmem_to_hbm [thread:$0]  %s593, 128, %s590, %s575
        $region52: #{tpu_custom_call.1} parent=39 // pred_fallthru
          _
        // Predicated region
        $region53: #{tpu_custom_call.1} parent=39 // pred_check
          %p596 = pneg %p209
        $region54: #{tpu_custom_call.1} parent=39 // pred_check_branch
          %598 = sbr.rel (%p596) target = $region56
        $region55: #{tpu_custom_call.1} parent=39 // pred_region
          %s599 = sadd.s32 %s29, %s30
          %s601 = ssub.s32 16, 16
          %602 = vsyncadd %s580, %s601
          %s603 = smul.addr %s599, 16
          %s604 = scalar_lea.hbm %s6, %s603
          %s606 = sshll.u32 %s582, 4
          %s607 = int_to_ptr.vmem [resolvable:$true] %s606
          %609 = dma.vmem_to_hbm [thread:$0]  %s607, 16, %s604, %s580
        $region56: #{tpu_custom_call.1} parent=39 // pred_fallthru
          _
      $region40: #{tpu_custom_call.1} parent=5 // pred_fallthru
        _
      %p610 = scmp.le.s32.totalorder 2, %s20
      // Predicated region
      $region57: #{tpu_custom_call.1} parent=5 // pred_check
        %p611 = pneg %p610
      $region58: #{tpu_custom_call.1} parent=5 // pred_check_branch
        %613 = sbr.rel (%p611) target = $region60
      $region59: #{tpu_custom_call.1} parent=5 // pred_region
        %s614 = ssub.s32 %s20, 2
        // Predicated region
        $region61: #{tpu_custom_call.1} parent=59 // pred_check
          %p615 = pneg %p187
        $region62: #{tpu_custom_call.1} parent=59 // pred_check_branch
          %617 = sbr.rel (%p615) target = $region64
        $region63: #{tpu_custom_call.1} parent=59 // pred_region
          %s618 = sand.u32 %s172, 1
          %s619 = scalar_lea.sflag [#allocation5], %s618
          %s620 = sand.u32 %s172, 1
          %s621 = smul.addr %s620, 8
          %s622 = scalar_lea.vmem [#allocation4], %s621
          %623 = dma.done %s619, 128
        $region64: #{tpu_custom_call.1} parent=59 // pred_fallthru
          _
        // Predicated region
        $region65: #{tpu_custom_call.1} parent=59 // pred_check
          %p624 = pneg %p215
        $region66: #{tpu_custom_call.1} parent=59 // pred_check_branch
          %626 = sbr.rel (%p624) target = $region68
        $region67: #{tpu_custom_call.1} parent=59 // pred_region
          %s627 = sand.u32 %s200, 1
          %s628 = scalar_lea.sflag [#allocation7], %s627
          %s629 = sand.u32 %s200, 1
          %s630 = scalar_lea.vmem [#allocation6], %s629
          %631 = dma.done %s628, 16
        $region68: #{tpu_custom_call.1} parent=59 // pred_fallthru
          _
      $region60: #{tpu_custom_call.1} parent=5 // pred_fallthru
        _
    $region6: #{tpu_custom_call.1} parent=1 // loop_footer
      %s24 = sadd.s32 1, %s20
    $region7: #{tpu_custom_call.1} parent=1 // loop_footer_branch
      %19 = sbr.rel target = $region3
    $region8: #{tpu_custom_call.1} parent=1 // loop_exit
      _
    %632 = vsyncpa [#allocation5], 1
    %s633 = scalar_lea.sflag [#allocation5], 1
    %634 = vsyncpa %s633, 1
    %635 = vsyncpa [#allocation7], 1
    %s636 = scalar_lea.sflag [#allocation7], 1
    %637 = vsyncpa %s636, 1

</llo_original>
